<compile_context>
chip_gen: v6e
topology: v6e:2x2x1
jax: 0.10.0
libtpu: 0.0.40
codegen_flags: <defaults>
</compile_context>

<pallas_src>
import numpy as np
import jax
import jax.numpy as jnp
from jax.experimental import pallas as pl
from jax.experimental.pallas import tpu as pltpu


_LANE = 128
_SUBLANE = 8
_PARAMS_COLS = 8   # [left, top, right, bottom, new_w, new_h, valid, threshold] (f32)


def _round_up(x, m):
    return ((x + m - 1) // m) * m


def _iou_crop_trials_kernel(params_ref, boxes_ref, accept_ref, mask_ref):
    """Single grid step; all trials vectorized on the sublane axis.

    params_ref : VMEM f32[T_pad, 8]      per-trial crop params (see _PARAMS_COLS)
    boxes_ref  : VMEM f32[4, N_pad]      rows = x1, y1, x2, y2 (box idx on lanes)
    accept_ref : VMEM f32[T_pad, 128]    accept bit per trial (broadcast on lanes)
    mask_ref   : VMEM f32[T_pad, N_pad]  within-crop-center mask per trial
    """
    p = params_ref[...]                     # (T_pad, 8)
    left = p[:, 0:1]                        # (T_pad, 1) column operands
    top = p[:, 1:2]
    right = p[:, 2:3]
    bottom = p[:, 3:4]
    valid = p[:, 6:7]
    thr = p[:, 7:8]

    b = boxes_ref[...]                      # (4, N_pad)
    x1 = b[0:1, :]                          # (1, N_pad) row operands
    y1 = b[1:2, :]
    x2 = b[2:3, :]
    y2 = b[3:4, :]

    # within-crop-center mask, (T_pad, N_pad) via column x row broadcast
    cx = 0.5 * (x1 + x2)
    cy = 0.5 * (y1 + y2)
    within = (left < cx) & (cx < right) & (top < cy) & (cy < bottom)
    within_f = within.astype(jnp.float32)

    # IoU(box, crop) accept test in multiply form (exact, no division):
    #   iou >= thr  <=>  inter >= thr * (area_box + area_crop - inter)
    area_box = (x2 - x1) * (y2 - y1)                      # (1, N_pad)
    area_crop = (right - left) * (bottom - top)           # (T_pad, 1)
    ix1 = jnp.maximum(x1, left)
    iy1 = jnp.maximum(y1, top)
    ix2 = jnp.minimum(x2, right)
    iy2 = jnp.minimum(y2, bottom)
    inter = jnp.maximum(ix2 - ix1, 0.0) * jnp.maximum(iy2 - iy1, 0.0)
    union = area_box + area_crop - inter
    iou_ok = within & (inter >= thr * union)              # (T_pad, N_pad)

    # accept = valid & exists(box within crop with IoU >= thr)
    has_hit = jnp.max(iou_ok.astype(jnp.float32), axis=1, keepdims=True)  # (T_pad,1)
    accept = valid * has_hit                                              # (T_pad,1)

    accept_ref[...] = jnp.broadcast_to(accept, accept_ref.shape)  # lane-dense store
    mask_ref[...] = within_f


@jax.jit
def _run_trials(params, boxes_pad):
    """Evaluate every candidate crop in one single-step pallas_call.

    params    : f32[T_pad, 8]     per-trial crop params (padded rows have valid=0)
    boxes_pad : f32[4, N_pad]     transposed, lane-padded boxes
    returns (accept[T_pad, 128], within_mask[T_pad, N_pad]) as f32.
    """
    t_pad = params.shape[0]
    n_pad = boxes_pad.shape[1]
    return pl.pallas_call(
        _iou_crop_trials_kernel,
        grid=(1,),
        in_specs=[
            pl.BlockSpec((t_pad, _PARAMS_COLS), lambda i: (0, 0)),
            pl.BlockSpec((4, n_pad), lambda i: (0, 0)),
        ],
        out_specs=(
            pl.BlockSpec((t_pad, _LANE), lambda i: (0, 0)),
            pl.BlockSpec((t_pad, n_pad), lambda i: (0, 0)),
        ),
        out_shape=(
            jax.ShapeDtypeStruct((t_pad, _LANE), jnp.float32),
            jax.ShapeDtypeStruct((t_pad, n_pad), jnp.float32),
        ),
        compiler_params=pltpu.CompilerParams(
            dimension_semantics=("arbitrary",)),
    )(params, boxes_pad)


def _pad_boxes_lane_major(boxes_np, n_pad):
    """(N, 4) xyxy -> (4, N_pad) with dummy far-away boxes in the padding."""
    out = np.full((4, n_pad), -1e6, dtype=np.float32)
    n = boxes_np.shape[0]
    if n:
        out[:, :n] = boxes_np.T
    return out


class RandomIoUCropV1Pallas:
    def __init__(self, min_scale=0.3, max_scale=1.0, min_aspect_ratio=0.5,
                 max_aspect_ratio=2.0, sampler_options=None, trials=40):
        self.min_scale = min_scale
        self.max_scale = max_scale
        self.min_aspect_ratio = min_aspect_ratio
        self.max_aspect_ratio = max_aspect_ratio
        if sampler_options is None:
            sampler_options = [0.0, 0.1, 0.3, 0.5, 0.7, 0.9, 1.0]
        self.options = sampler_options
        self.trials = trials

    def __call__(self, image, target, key):
        if target is None:
            raise ValueError("The targets can't be None for this transform.")
        if image.ndim not in (2, 3):
            raise ValueError(
                f"image should be 2/3 dimensional. Got {image.ndim} dimensions."
            )
        if image.ndim == 2:
            image = image[None]
        _, orig_h, orig_w = image.shape

        # One-time host syncs: seed a numpy RNG from the JAX key and pull the
        # boxes/labels once; after this the only per-iteration device round
        # trip is the single kernel-output readback.
        seed = int(jax.device_get(
            jax.random.randint(key, (), 0, np.iinfo(np.int32).max)))
        rng = np.random.default_rng(seed)
        boxes_np = np.asarray(jax.device_get(target["boxes"]), dtype=np.float32)
        labels_np = np.asarray(jax.device_get(target["labels"]))
        n = boxes_np.shape[0]
        n_pad = max(_LANE, _round_up(max(n, 1), _LANE))
        boxes_pad_dev = jnp.asarray(_pad_boxes_lane_major(boxes_np, n_pad))
        t_pad = max(_SUBLANE, _round_up(self.trials, _SUBLANE))

        # TODO(synk): original uses `while True`; bounded here to guarantee
        # termination (functionally identical in practice since acceptance
        # probability per outer iteration is high).
        max_outer = 1000
        for _ in range(max_outer):
            idx = int(rng.integers(0, len(self.options)))
            min_jaccard_overlap = self.options[idx]
            if min_jaccard_overlap >= 1.0:
                return image, target

            # Vectorized host-side candidate generation (pure numpy, no syncs).
            u = rng.random((self.trials, 4))
            scale = self.min_scale + (self.max_scale - self.min_scale) * u[:, :2]
            new_w = (orig_w * scale[:, 0]).astype(np.int64)
            new_h = (orig_h * scale[:, 1]).astype(np.int64)
            valid = new_h > 0
            aspect = new_w / np.maximum(new_h, 1)
            valid &= (self.min_aspect_ratio <= aspect) & (aspect <= self.max_aspect_ratio)
            left = ((orig_w - new_w) * u[:, 2]).astype(np.int64)
            top = ((orig_h - new_h) * u[:, 3]).astype(np.int64)
            right = left + new_w
            bottom = top + new_h
            valid &= (left != right) & (top != bottom)
            if not valid.any():
                continue

            params = np.zeros((t_pad, _PARAMS_COLS), dtype=np.float32)
            params[:self.trials, 0] = left
            params[:self.trials, 1] = top
            params[:self.trials, 2] = right
            params[:self.trials, 3] = bottom
            params[:self.trials, 4] = new_w
            params[:self.trials, 5] = new_h
            params[:self.trials, 6] = valid.astype(np.float32)
            params[:self.trials, 7] = min_jaccard_overlap

            # --- Pallas hot path: all trials, one grid step, one launch ---
            accept_dev, masks_dev = _run_trials(jnp.asarray(params), boxes_pad_dev)
            accept_np, masks_np = jax.device_get((accept_dev, masks_dev))  # 1 sync

            accepted = accept_np[:self.trials, 0] > 0.5
            if not accepted.any():
                continue

            # First accepted trial in loop order (matches original semantics).
            ti = int(np.argmax(accepted))
            keep = masks_np[ti, :n] > 0.5

            l_i = int(left[ti])
            t_i = int(top[ti])
            w_i = int(new_w[ti])
            h_i = int(new_h[ti])

            # Shift + clamp only the accepted trial's kept boxes (host numpy).
            kept = boxes_np[keep].copy()
            kept[:, 0::2] -= l_i
            kept[:, 1::2] -= t_i
            kept[:, 0::2] = np.clip(kept[:, 0::2], 0.0, float(w_i))
            kept[:, 1::2] = np.clip(kept[:, 1::2], 0.0, float(h_i))

            target["boxes"] = jnp.asarray(kept, dtype=jnp.float32)
            target["labels"] = jnp.asarray(labels_np[keep])
            # image crop: concrete ints -> static slice (host-side glue)
            image = image[:, t_i:t_i + h_i, l_i:l_i + w_i]
            return image, target

        return image, target


if __name__ == "__main__":
    key = jax.random.PRNGKey(0)
    kimg, kcall = jax.random.split(key)

    C, H, W = 3, 16, 16
    image = jax.random.uniform(kimg, (C, H, W), dtype=jnp.float32)
    boxes = jnp.array(
        [
            [2.0, 2.0, 10.0, 10.0],
            [4.0, 5.0, 14.0, 12.0],
            [1.0, 1.0, 6.0, 6.0],
            [8.0, 8.0, 15.0, 15.0],
            [3.0, 7.0, 9.0, 13.0],
            [5.0, 2.0, 12.0, 9.0],
            [6.0, 6.0, 11.0, 11.0],
            [0.0, 3.0, 7.0, 12.0],
        ],
        dtype=jnp.float32,
    )
    labels = jnp.arange(boxes.shape[0], dtype=jnp.int32)
    target = {"boxes": boxes, "labels": labels}

    # Guaranteed exercise of the single-step Pallas kernel (the transform
    # itself may early-return without cropping when min_jaccard_overlap == 1.0
    # is sampled).
    trials = 40
    t_pad = _round_up(trials, _SUBLANE)
    boxes_pad = _pad_boxes_lane_major(np.asarray(boxes), _LANE)
    demo = np.zeros((t_pad, _PARAMS_COLS), dtype=np.float32)
    demo[:trials, 0] = 2.0    # left
    demo[:trials, 1] = 2.0    # top
    demo[:trials, 2] = 12.0   # right
    demo[:trials, 3] = 12.0   # bottom
    demo[:trials, 4] = 10.0   # new_w
    demo[:trials, 5] = 10.0   # new_h
    demo[:trials, 6] = 1.0    # valid
    demo[:trials, 7] = 0.3    # min_jaccard_overlap
    acc, masks = _run_trials(jnp.asarray(demo), jnp.asarray(boxes_pad))
    acc, masks = jax.device_get((acc, masks))
    # Crop (2,2,12,12) vs box (2,2,10,10): IoU = 64/100 = 0.64 >= 0.3 -> accept.
    assert float(acc[0, 0]) == 1.0, f"expected accept, got {acc[0, 0]}"
    assert masks[0, 0] == 1.0, "box 0 center should be within the demo crop"

    transform = RandomIoUCropV1Pallas()
    out_image, out_target = transform(image, target, kcall)
    jax.block_until_ready(out_image)
    jax.block_until_ready(out_target["boxes"])
    jax.block_until_ready(out_target["labels"])
    print("KERNEL_OK")
</pallas_src>

<mosaic_0001>
module attributes {stable_mosaic.version = 11 : i64} {
  func.func @_iou_crop_trials_kernel(%arg0: i32, %arg1: memref<40x8xf32, #tpu.memory_space<vmem>>, %arg2: memref<4x128xf32, #tpu.memory_space<vmem>>, %arg3: memref<40x128xf32, #tpu.memory_space<vmem>>, %arg4: memref<40x128xf32, #tpu.memory_space<vmem>>) attributes {dimension_semantics = [#tpu.dimension_semantics<arbitrary>], iteration_bounds = array<i64: 1>, scalar_prefetch = 0 : i64, scratch_operands = 0 : i64, tpu.core_type = #tpu.core_type<tc>, window_params = [{pipeline_mode = #tpu.pipeline_mode<synchronous>, transform_indices = @transform_0, window_bounds = array<i64: 40, 8>}, {pipeline_mode = #tpu.pipeline_mode<synchronous>, transform_indices = @transform_1, window_bounds = array<i64: 4, 128>}, {pipeline_mode = #tpu.pipeline_mode<synchronous>, transform_indices = @transform_2, window_bounds = array<i64: 40, 128>}, {pipeline_mode = #tpu.pipeline_mode<synchronous>, transform_indices = @transform_3, window_bounds = array<i64: 40, 128>}]} {
    %c0 = arith.constant 0 : index
    %c0_0 = arith.constant 0 : index
    %0 = vector.load %arg1[%c0, %c0_0] : memref<40x8xf32, #tpu.memory_space<vmem>>, vector<40x8xf32>
    %1 = vector.extract_strided_slice %0 {offsets = [0, 0], sizes = [40, 1], strides = [1, 1]} : vector<40x8xf32> to vector<40x1xf32>
    %2 = vector.extract_strided_slice %0 {offsets = [0, 1], sizes = [40, 1], strides = [1, 1]} : vector<40x8xf32> to vector<40x1xf32>
    %3 = vector.extract_strided_slice %0 {offsets = [0, 2], sizes = [40, 1], strides = [1, 1]} : vector<40x8xf32> to vector<40x1xf32>
    %4 = vector.extract_strided_slice %0 {offsets = [0, 3], sizes = [40, 1], strides = [1, 1]} : vector<40x8xf32> to vector<40x1xf32>
    %5 = vector.extract_strided_slice %0 {offsets = [0, 6], sizes = [40, 1], strides = [1, 1]} : vector<40x8xf32> to vector<40x1xf32>
    %6 = vector.extract_strided_slice %0 {offsets = [0, 7], sizes = [40, 1], strides = [1, 1]} : vector<40x8xf32> to vector<40x1xf32>
    %c0_1 = arith.constant 0 : index
    %c0_2 = arith.constant 0 : index
    %7 = vector.load %arg2[%c0_1, %c0_2] : memref<4x128xf32, #tpu.memory_space<vmem>>, vector<4x128xf32>
    %8 = vector.extract_strided_slice %7 {offsets = [0, 0], sizes = [1, 128], strides = [1, 1]} : vector<4x128xf32> to vector<1x128xf32>
    %9 = vector.extract_strided_slice %7 {offsets = [1, 0], sizes = [1, 128], strides = [1, 1]} : vector<4x128xf32> to vector<1x128xf32>
    %10 = vector.extract_strided_slice %7 {offsets = [2, 0], sizes = [1, 128], strides = [1, 1]} : vector<4x128xf32> to vector<1x128xf32>
    %11 = vector.extract_strided_slice %7 {offsets = [3, 0], sizes = [1, 128], strides = [1, 1]} : vector<4x128xf32> to vector<1x128xf32>
    %12 = arith.addf %8, %10 : vector<1x128xf32>
    %cst = arith.constant 5.000000e-01 : f32
    %13 = vector.broadcast %cst : f32 to vector<1x128xf32>
    %14 = arith.mulf %13, %12 : vector<1x128xf32>
    %15 = arith.addf %9, %11 : vector<1x128xf32>
    %cst_3 = arith.constant 5.000000e-01 : f32
    %16 = vector.broadcast %cst_3 : f32 to vector<1x128xf32>
    %17 = arith.mulf %16, %15 : vector<1x128xf32>
    %18 = vector.broadcast %1 : vector<40x1xf32> to vector<40x128xf32>
    %19 = vector.broadcast %14 : vector<1x128xf32> to vector<40x128xf32>
    %20 = arith.cmpf olt, %18, %19 : vector<40x128xf32>
    %21 = vector.broadcast %14 : vector<1x128xf32> to vector<40x128xf32>
    %22 = vector.broadcast %3 : vector<40x1xf32> to vector<40x128xf32>
    %23 = arith.cmpf olt, %21, %22 : vector<40x128xf32>
    %24 = arith.andi %20, %23 : vector<40x128xi1>
    %25 = vector.broadcast %2 : vector<40x1xf32> to vector<40x128xf32>
    %26 = vector.broadcast %17 : vector<1x128xf32> to vector<40x128xf32>
    %27 = arith.cmpf olt, %25, %26 : vector<40x128xf32>
    %28 = arith.andi %24, %27 : vector<40x128xi1>
    %29 = vector.broadcast %17 : vector<1x128xf32> to vector<40x128xf32>
    %30 = vector.broadcast %4 : vector<40x1xf32> to vector<40x128xf32>
    %31 = arith.cmpf olt, %29, %30 : vector<40x128xf32>
    %32 = arith.andi %28, %31 : vector<40x128xi1>
    %33 = arith.extui %32 : vector<40x128xi1> to vector<40x128xi32>
    %34 = arith.sitofp %33 : vector<40x128xi32> to vector<40x128xf32>
    %35 = arith.subf %10, %8 : vector<1x128xf32>
    %36 = arith.subf %11, %9 : vector<1x128xf32>
    %37 = arith.mulf %35, %36 : vector<1x128xf32>
    %38 = arith.subf %3, %1 : vector<40x1xf32>
    %39 = arith.subf %4, %2 : vector<40x1xf32>
    %40 = arith.mulf %38, %39 : vector<40x1xf32>
    %41 = vector.broadcast %8 : vector<1x128xf32> to vector<40x128xf32>
    %42 = vector.broadcast %1 : vector<40x1xf32> to vector<40x128xf32>
    %43 = arith.maximumf %41, %42 : vector<40x128xf32>
    %44 = vector.broadcast %9 : vector<1x128xf32> to vector<40x128xf32>
    %45 = vector.broadcast %2 : vector<40x1xf32> to vector<40x128xf32>
    %46 = arith.maximumf %44, %45 : vector<40x128xf32>
    %47 = vector.broadcast %10 : vector<1x128xf32> to vector<40x128xf32>
    %48 = vector.broadcast %3 : vector<40x1xf32> to vector<40x128xf32>
    %49 = arith.minimumf %47, %48 : vector<40x128xf32>
    %50 = vector.broadcast %11 : vector<1x128xf32> to vector<40x128xf32>
    %51 = vector.broadcast %4 : vector<40x1xf32> to vector<40x128xf32>
    %52 = arith.minimumf %50, %51 : vector<40x128xf32>
    %53 = arith.subf %49, %43 : vector<40x128xf32>
    %cst_4 = arith.constant 0.000000e+00 : f32
    %54 = vector.broadcast %cst_4 : f32 to vector<40x128xf32>
    %55 = arith.maximumf %53, %54 : vector<40x128xf32>
    %56 = arith.subf %52, %46 : vector<40x128xf32>
    %cst_5 = arith.constant 0.000000e+00 : f32
    %57 = vector.broadcast %cst_5 : f32 to vector<40x128xf32>
    %58 = arith.maximumf %56, %57 : vector<40x128xf32>
    %59 = arith.mulf %55, %58 : vector<40x128xf32>
    %60 = vector.broadcast %37 : vector<1x128xf32> to vector<40x128xf32>
    %61 = vector.broadcast %40 : vector<40x1xf32> to vector<40x128xf32>
    %62 = arith.addf %60, %61 : vector<40x128xf32>
    %63 = arith.subf %62, %59 : vector<40x128xf32>
    %64 = vector.broadcast %6 : vector<40x1xf32> to vector<40x128xf32>
    %65 = arith.mulf %64, %63 : vector<40x128xf32>
    %66 = arith.cmpf oge, %59, %65 : vector<40x128xf32>
    %67 = arith.andi %32, %66 : vector<40x128xi1>
    %68 = arith.extui %67 : vector<40x128xi1> to vector<40x128xi32>
    %69 = arith.sitofp %68 : vector<40x128xi32> to vector<40x128xf32>
    %cst_6 = arith.constant dense<0xFF800000> : vector<40xf32>
    %70 = vector.multi_reduction <maximumf>, %69, %cst_6 [1] : vector<40x128xf32> to vector<40xf32>
    %71 = vector.shape_cast %70 : vector<40xf32> to vector<40x1xf32>
    %72 = arith.mulf %5, %71 : vector<40x1xf32>
    %73 = vector.shape_cast %72 : vector<40x1xf32> to vector<40x1xf32>
    %74 = vector.broadcast %73 : vector<40x1xf32> to vector<40x128xf32>
    %c0_7 = arith.constant 0 : index
    %c0_8 = arith.constant 0 : index
    %75 = vector.load %arg3[%c0_7, %c0_8] : memref<40x128xf32, #tpu.memory_space<vmem>>, vector<40x128xf32>
    tpu.vector_store %arg3[%c0_7, %c0_8], %74 {strides = array<i32>} : memref<40x128xf32, #tpu.memory_space<vmem>>, vector<40x128xf32>,
    %c0_9 = arith.constant 0 : index
    %c0_10 = arith.constant 0 : index
    %76 = vector.load %arg4[%c0_9, %c0_10] : memref<40x128xf32, #tpu.memory_space<vmem>>, vector<40x128xf32>
    tpu.vector_store %arg4[%c0_9, %c0_10], %34 {strides = array<i32>} : memref<40x128xf32, #tpu.memory_space<vmem>>, vector<40x128xf32>,
    return
  }
  func.func @transform_0(%arg0: i32) -> (i32, i32) {
    %c0_i32 = arith.constant 0 : i32
    %c0_i32_0 = arith.constant 0 : i32
    %c0_i32_1 = arith.constant 0 : i32
    return %c0_i32, %c0_i32_0 : i32, i32
  }
  func.func @transform_1(%arg0: i32) -> (i32, i32) {
    %c0_i32 = arith.constant 0 : i32
    %c0_i32_0 = arith.constant 0 : i32
    %c0_i32_1 = arith.constant 0 : i32
    return %c0_i32, %c0_i32_0 : i32, i32
  }
  func.func @transform_2(%arg0: i32) -> (i32, i32) {
    %c0_i32 = arith.constant 0 : i32
    %c0_i32_0 = arith.constant 0 : i32
    %c0_i32_1 = arith.constant 0 : i32
    return %c0_i32, %c0_i32_0 : i32, i32
  }
  func.func @transform_3(%arg0: i32) -> (i32, i32) {
    %c0_i32 = arith.constant 0 : i32
    %c0_i32_0 = arith.constant 0 : i32
    %c0_i32_1 = arith.constant 0 : i32
    return %c0_i32, %c0_i32_0 : i32, i32
  }
}

</mosaic_0001>

<llo_original>
// kernel: _run_trials.1
$region0: #{_run_trials.1}
  #allocation0 [shape = 'u32[]', space=smem, size = 0x4, offset = 0x4, fixed_abs, tag = 'smem constant byte address 0x4 - core index']
  #allocation1 [shape = 'u32[144,128]{1,0:T(1,128)}', space=vmem, size = 0x12000, scoped, tag = 'internal scratch']
  %s0 = inlined_call_operand.vmem [shape: f32[40,8], index: 0, kind: input, shape index: {}]
  %s1 = inlined_call_operand.vmem [shape: f32[4,128], index: 1, kind: input, shape index: {}]
  %s2 = inlined_call_operand.hbm [shape: f32[40,128], index: 2, kind: output, shape index: {0}]
  %s3 = inlined_call_operand.hbm [shape: f32[40,128], index: 3, kind: output, shape index: {1}]
  %4 = xla_tuple %s2, %s3
  %s5 = sld [smem:[#allocation0]]
  $region26: #{_run_trials.1} parent=0
    _
  %s7 = ssub.s32 1, %s5
  %s8 = scalar_select 0, %s7, %s5
  $region1: #{_run_trials.1} parent=0
    #allocation2 [shape = 'u8[20480]{0}', space=vmem, size = 0x5000, scoped, tag = 'output window, operand 0, single buffered']
    #allocation3 [shape = 's32[1]{0}', space=sflag, size = 0x4, scoped, tag = 'scoped memory for _run_trials.1']
    #allocation4 [shape = 'u8[20480]{0}', space=vmem, size = 0x5000, scoped, tag = 'output window, operand 1, single buffered']
    #allocation5 [shape = 's32[1]{0}', space=sflag, size = 0x4, scoped, tag = 'scoped memory for _run_trials.1']
    %9 = vsyncpa [#allocation3], 0
    %10 = vsyncpa [#allocation5], 0
    // Predicated region
    $region2: #{_run_trials.1} parent=1 // pred_check
      _
    $region3: #{_run_trials.1} parent=1 // pred_check_branch
      %12 = sbr.rel (0) target = $region5
    $region4: #{_run_trials.1} parent=1 // pred_region
      _
    $region5: #{_run_trials.1} parent=1 // pred_fallthru
      _
    // Predicated region
    $region6: #{_run_trials.1} parent=1 // pred_check
      _
    $region7: #{_run_trials.1} parent=1 // pred_check_branch
      %14 = sbr.rel (0) target = $region9
    $region8: #{_run_trials.1} parent=1 // pred_region
      _
    $region9: #{_run_trials.1} parent=1 // pred_fallthru
      _
    %v15 = vld [vmem:[%s0] sm:$0xff]
    %v16 = vld [vmem:[%s0 + $0x8] sm:$0xff]
    %v17 = vld [vmem:[%s0 + $0x10] sm:$0xff]
    %v18 = vld [vmem:[%s0 + $0x18] sm:$0xff]
    %v19 = vld [vmem:[%s0 + $0x20] sm:$0xff]
    %v20 = vld [vmem:[%s1] sm:$0xf]
    %v22 = vrot.slane %v20, 2
    %v24 = vadd.f32 %v20, %v22
    %v25 = vmul.f32 %v24, 0.5
    %27 = vset.pattern.permute.xlu0 0
    %28 = vperm.xlu0 %27, %v15
    %v29 = vpop.permute.xlu0 %28
    %32 = vset.pattern.permute.xlu0 0
    %33 = vperm.xlu0 %32, %v16
    %v34 = vpop.permute.xlu0 %33
    %37 = vset.pattern.permute.xlu0 0
    %38 = vperm.xlu0 %37, %v17
    %v39 = vpop.permute.xlu0 %38
    %42 = vset.pattern.permute.xlu0 0
    %43 = vperm.xlu0 %42, %v18
    %v44 = vpop.permute.xlu0 %43
    %47 = vset.pattern.permute.xlu0 0
    %48 = vperm.xlu0 %47, %v19
    %v49 = vpop.permute.xlu0 %48
    %v51 = vlaneseq
    %v52 = vshrl.u32 %v51, 7
    %v53 = vsub.s32 0, %v52
    %v54 = vrot.slane %v25, %v53
    %vm55 = vcmp.lt.f32.partialorder %v29, %v54
    %vm56 = vcmp.lt.f32.partialorder %v34, %v54
    %vm57 = vcmp.lt.f32.partialorder %v39, %v54
    %vm58 = vcmp.lt.f32.partialorder %v44, %v54
    %vm59 = vcmp.lt.f32.partialorder %v49, %v54
    %60 = vset.pattern.permute.xlu0 2
    %61 = vperm.xlu0 %60, %v15
    %v62 = vpop.permute.xlu0 %61
    %64 = vset.pattern.permute.xlu0 2
    %65 = vperm.xlu0 %64, %v16
    %v66 = vpop.permute.xlu0 %65
    %68 = vset.pattern.permute.xlu0 2
    %69 = vperm.xlu0 %68, %v17
    %v70 = vpop.permute.xlu0 %69
    %72 = vset.pattern.permute.xlu0 2
    %73 = vperm.xlu0 %72, %v18
    %v74 = vpop.permute.xlu0 %73
    %76 = vset.pattern.permute.xlu0 2
    %77 = vperm.xlu0 %76, %v19
    %v78 = vpop.permute.xlu0 %77
    %vm80 = vcmp.lt.f32.partialorder %v54, %v62
    %vm81 = vcmp.lt.f32.partialorder %v54, %v66
    %vm82 = vcmp.lt.f32.partialorder %v54, %v70
    %vm83 = vcmp.lt.f32.partialorder %v54, %v74
    %vm84 = vcmp.lt.f32.partialorder %v54, %v78
    %vm85 = vmand %vm55, %vm80
    %vm86 = vmand %vm56, %vm81
    %vm87 = vmand %vm57, %vm82
    %vm88 = vmand %vm58, %vm83
    %vm89 = vmand %vm59, %vm84
    %90 = vset.pattern.permute.xlu0 1
    %91 = vperm.xlu0 %90, %v15
    %v92 = vpop.permute.xlu0 %91
    %94 = vset.pattern.permute.xlu0 1
    %95 = vperm.xlu0 %94, %v16
    %v96 = vpop.permute.xlu0 %95
    %98 = vset.pattern.permute.xlu0 1
    %99 = vperm.xlu0 %98, %v17
    %v100 = vpop.permute.xlu0 %99
    %102 = vset.pattern.permute.xlu0 1
    %103 = vperm.xlu0 %102, %v18
    %v104 = vpop.permute.xlu0 %103
    %106 = vset.pattern.permute.xlu0 1
    %107 = vperm.xlu0 %106, %v19
    %v108 = vpop.permute.xlu0 %107
    %v110 = vlaneseq
    %v111 = vshrl.u32 %v110, 7
    %v112 = vsub.s32 1, %v111
    %v113 = vrot.slane %v25, %v112
    %vm114 = vcmp.lt.f32.partialorder %v92, %v113
    %vm115 = vcmp.lt.f32.partialorder %v96, %v113
    %vm116 = vcmp.lt.f32.partialorder %v100, %v113
    %vm117 = vcmp.lt.f32.partialorder %v104, %v113
    %vm118 = vcmp.lt.f32.partialorder %v108, %v113
    %vm119 = vmand %vm85, %vm114
    %vm120 = vmand %vm86, %vm115
    %vm121 = vmand %vm87, %vm116
    %vm122 = vmand %vm88, %vm117
    %vm123 = vmand %vm89, %vm118
    %124 = vset.pattern.permute.xlu0 3
    %125 = vperm.xlu0 %124, %v15
    %v126 = vpop.permute.xlu0 %125
    %128 = vset.pattern.permute.xlu0 3
    %129 = vperm.xlu0 %128, %v16
    %v130 = vpop.permute.xlu0 %129
    %132 = vset.pattern.permute.xlu0 3
    %133 = vperm.xlu0 %132, %v17
    %v134 = vpop.permute.xlu0 %133
    %136 = vset.pattern.permute.xlu0 3
    %137 = vperm.xlu0 %136, %v18
    %v138 = vpop.permute.xlu0 %137
    %140 = vset.pattern.permute.xlu0 3
    %141 = vperm.xlu0 %140, %v19
    %v142 = vpop.permute.xlu0 %141
    %vm144 = vcmp.lt.f32.partialorder %v113, %v126
    %vm145 = vcmp.lt.f32.partialorder %v113, %v130
    %vm146 = vcmp.lt.f32.partialorder %v113, %v134
    %vm147 = vcmp.lt.f32.partialorder %v113, %v138
    %vm148 = vcmp.lt.f32.partialorder %v113, %v142
    %vm149 = vmand %vm119, %vm144
    %vm150 = vmand %vm120, %vm145
    %vm151 = vmand %vm121, %vm146
    %vm152 = vmand %vm122, %vm147
    %vm153 = vmand %vm123, %vm148
    %v154 = vsel %vm149, 1, 0
    %v155 = vsel %vm150, 1, 0
    %v156 = vsel %vm151, 1, 0
    %v157 = vsel %vm152, 1, 0
    %v158 = vsel %vm153, 1, 0
    %v159 = vcvt.s32.f32 %v154
    %v160 = vcvt.s32.f32 %v155
    %v161 = vcvt.s32.f32 %v156
    %v162 = vcvt.s32.f32 %v157
    %v163 = vcvt.s32.f32 %v158
    %v164 = vrot.slane %v20, 6
    %v166 = vsub.f32 %v20, %v164
    %v168 = vrot.slane %v166, 1
    %v170 = vmul.f32 %v166, %v168
    %171 = vrot.lane.b32.xlu0 %v15, 2
    %v172 = vpop.permute.xlu0 %171
    %173 = vrot.lane.b32.xlu0 %v16, 2
    %v174 = vpop.permute.xlu0 %173
    %175 = vrot.lane.b32.xlu0 %v17, 2
    %v176 = vpop.permute.xlu0 %175
    %177 = vrot.lane.b32.xlu0 %v18, 2
    %v178 = vpop.permute.xlu0 %177
    %179 = vrot.lane.b32.xlu0 %v19, 2
    %v180 = vpop.permute.xlu0 %179
    %v186 = vsub.f32 %v15, %v172
    %v187 = vsub.f32 %v16, %v174
    %v188 = vsub.f32 %v17, %v176
    %v189 = vsub.f32 %v18, %v178
    %v190 = vsub.f32 %v19, %v180
    %196 = vrot.lane.b32.xlu0 %v186, 127
    %v197 = vpop.permute.xlu0 %196
    %198 = vrot.lane.b32.xlu0 %v187, 127
    %v199 = vpop.permute.xlu0 %198
    %200 = vrot.lane.b32.xlu0 %v188, 127
    %v201 = vpop.permute.xlu0 %200
    %202 = vrot.lane.b32.xlu0 %v189, 127
    %v203 = vpop.permute.xlu0 %202
    %204 = vrot.lane.b32.xlu0 %v190, 127
    %v205 = vpop.permute.xlu0 %204
    %v211 = vmul.f32 %v186, %v197
    %v212 = vmul.f32 %v187, %v199
    %v213 = vmul.f32 %v188, %v201
    %v214 = vmul.f32 %v189, %v203
    %v215 = vmul.f32 %v190, %v205
    %v216 = vlaneseq
    %v217 = vshrl.u32 %v216, 7
    %v218 = vsub.s32 0, %v217
    %v219 = vrot.slane %v20, %v218
    %v220 = vmax.f32 %v219, %v29
    %v221 = vmax.f32 %v219, %v34
    %v222 = vmax.f32 %v219, %v39
    %v223 = vmax.f32 %v219, %v44
    %v224 = vmax.f32 %v219, %v49
    %v225 = vlaneseq
    %v226 = vshrl.u32 %v225, 7
    %v227 = vsub.s32 1, %v226
    %v228 = vrot.slane %v20, %v227
    %v229 = vmax.f32 %v228, %v92
    %v230 = vmax.f32 %v228, %v96
    %v231 = vmax.f32 %v228, %v100
    %v232 = vmax.f32 %v228, %v104
    %v233 = vmax.f32 %v228, %v108
    %v234 = vlaneseq
    %v235 = vshrl.u32 %v234, 7
    %v236 = vsub.s32 2, %v235
    %v237 = vrot.slane %v20, %v236
    %v238 = vmin.f32 %v237, %v62
    %v239 = vmin.f32 %v237, %v66
    %v240 = vmin.f32 %v237, %v70
    %v241 = vmin.f32 %v237, %v74
    %v242 = vmin.f32 %v237, %v78
    %v243 = vlaneseq
    %v244 = vshrl.u32 %v243, 7
    %v245 = vsub.s32 3, %v244
    %v246 = vrot.slane %v20, %v245
    %v247 = vmin.f32 %v246, %v126
    %v248 = vmin.f32 %v246, %v130
    %v249 = vmin.f32 %v246, %v134
    %v250 = vmin.f32 %v246, %v138
    %v251 = vmin.f32 %v246, %v142
    %v252 = vsub.f32 %v238, %v220
    %v253 = vsub.f32 %v239, %v221
    %v254 = vsub.f32 %v240, %v222
    %v255 = vsub.f32 %v241, %v223
    %v256 = vsub.f32 %v242, %v224
    %v257 = vmax.f32 %v252, 0.0
    %v258 = vmax.f32 %v253, 0.0
    %v259 = vmax.f32 %v254, 0.0
    %v260 = vmax.f32 %v255, 0.0
    %v261 = vmax.f32 %v256, 0.0
    %v262 = vsub.f32 %v247, %v229
    %v263 = vsub.f32 %v248, %v230
    %v264 = vsub.f32 %v249, %v231
    %v265 = vsub.f32 %v250, %v232
    %v266 = vsub.f32 %v251, %v233
    %v267 = vmax.f32 %v262, 0.0
    %v268 = vmax.f32 %v263, 0.0
    %v269 = vmax.f32 %v264, 0.0
    %v270 = vmax.f32 %v265, 0.0
    %v271 = vmax.f32 %v266, 0.0
    %v272 = vmul.f32 %v257, %v267
    %v273 = vmul.f32 %v258, %v268
    %v274 = vmul.f32 %v259, %v269
    %v275 = vmul.f32 %v260, %v270
    %v276 = vmul.f32 %v261, %v271
    %v277 = vlaneseq
    %v278 = vshrl.u32 %v277, 7
    %v279 = vsub.s32 2, %v278
    %v280 = vrot.slane %v170, %v279
    %282 = vset.pattern.permute.xlu0 2
    %283 = vperm.xlu0 %282, %v211
    %v284 = vpop.permute.xlu0 %283
    %287 = vset.pattern.permute.xlu0 2
    %288 = vperm.xlu0 %287, %v212
    %v289 = vpop.permute.xlu0 %288
    %292 = vset.pattern.permute.xlu0 2
    %293 = vperm.xlu0 %292, %v213
    %v294 = vpop.permute.xlu0 %293
    %297 = vset.pattern.permute.xlu0 2
    %298 = vperm.xlu0 %297, %v214
    %v299 = vpop.permute.xlu0 %298
    %302 = vset.pattern.permute.xlu0 2
    %303 = vperm.xlu0 %302, %v215
    %v304 = vpop.permute.xlu0 %303
    %v306 = vadd.f32 %v280, %v284
    %v307 = vadd.f32 %v280, %v289
    %v308 = vadd.f32 %v280, %v294
    %v309 = vadd.f32 %v280, %v299
    %v310 = vadd.f32 %v280, %v304
    %v311 = vsub.f32 %v306, %v272
    %v312 = vsub.f32 %v307, %v273
    %v313 = vsub.f32 %v308, %v274
    %v314 = vsub.f32 %v309, %v275
    %v315 = vsub.f32 %v310, %v276
    %316 = vset.pattern.permute.xlu0 7
    %317 = vperm.xlu0 %316, %v15
    %v318 = vpop.permute.xlu0 %317
    %320 = vset.pattern.permute.xlu0 7
    %321 = vperm.xlu0 %320, %v16
    %v322 = vpop.permute.xlu0 %321
    %324 = vset.pattern.permute.xlu0 7
    %325 = vperm.xlu0 %324, %v17
    %v326 = vpop.permute.xlu0 %325
    %328 = vset.pattern.permute.xlu0 7
    %329 = vperm.xlu0 %328, %v18
    %v330 = vpop.permute.xlu0 %329
    %332 = vset.pattern.permute.xlu0 7
    %333 = vperm.xlu0 %332, %v19
    %v334 = vpop.permute.xlu0 %333
    %v336 = vmul.f32 %v318, %v311
    %v337 = vmul.f32 %v322, %v312
    %v338 = vmul.f32 %v326, %v313
    %v339 = vmul.f32 %v330, %v314
    %v340 = vmul.f32 %v334, %v315
    %vm341 = vcmp.ge.f32.partialorder %v272, %v336
    %vm342 = vcmp.ge.f32.partialorder %v273, %v337
    %vm343 = vcmp.ge.f32.partialorder %v274, %v338
    %vm344 = vcmp.ge.f32.partialorder %v275, %v339
    %vm345 = vcmp.ge.f32.partialorder %v276, %v340
    %vm346 = vmand %vm149, %vm341
    %vm347 = vmand %vm150, %vm342
    %vm348 = vmand %vm151, %vm343
    %vm349 = vmand %vm152, %vm344
    %vm350 = vmand %vm153, %vm345
    %v351 = vsel %vm346, 1, 0
    %v352 = vsel %vm347, 1, 0
    %v353 = vsel %vm348, 1, 0
    %v354 = vsel %vm349, 1, 0
    %v355 = vsel %vm350, 1, 0
    %v356 = vcvt.s32.f32 %v351
    %v357 = vcvt.s32.f32 %v352
    %v358 = vcvt.s32.f32 %v353
    %v359 = vcvt.s32.f32 %v354
    %v360 = vcvt.s32.f32 %v355
    %361 = vmax.xlane.f32.xlu0 %v356
    %v362 = vpop.xlane.xlu0 %361
    %363 = vmax.xlane.f32.xlu0 %v357
    %v364 = vpop.xlane.xlu0 %363
    %365 = vmax.xlane.f32.xlu0 %v358
    %v366 = vpop.xlane.xlu0 %365
    %367 = vmax.xlane.f32.xlu0 %v359
    %v368 = vpop.xlane.xlu0 %367
    %369 = vmax.xlane.f32.xlu0 %v360
    %v370 = vpop.xlane.xlu0 %369
    %v371 = vmul.f32 %v15, %v362
    %v372 = vmul.f32 %v16, %v364
    %v373 = vmul.f32 %v17, %v366
    %v374 = vmul.f32 %v18, %v368
    %v375 = vmul.f32 %v19, %v370
    %377 = vset.pattern.permute.xlu0 6
    %378 = vperm.xlu0 %377, %v371
    %v379 = vpop.permute.xlu0 %378
    %382 = vset.pattern.permute.xlu0 6
    %383 = vperm.xlu0 %382, %v372
    %v384 = vpop.permute.xlu0 %383
    %387 = vset.pattern.permute.xlu0 6
    %388 = vperm.xlu0 %387, %v373
    %v389 = vpop.permute.xlu0 %388
    %392 = vset.pattern.permute.xlu0 6
    %393 = vperm.xlu0 %392, %v374
    %v394 = vpop.permute.xlu0 %393
    %397 = vset.pattern.permute.xlu0 6
    %398 = vperm.xlu0 %397, %v375
    %v399 = vpop.permute.xlu0 %398
    %401 = vst [vmem:[#allocation2] sm:$0xff] %v379
    %402 = vst [vmem:[#allocation2 + $0x8] sm:$0xff] %v384
    %403 = vst [vmem:[#allocation2 + $0x10] sm:$0xff] %v389
    %404 = vst [vmem:[#allocation2 + $0x18] sm:$0xff] %v394
    %405 = vst [vmem:[#allocation2 + $0x20] sm:$0xff] %v399
    %406 = vst [vmem:[#allocation4] sm:$0xff] %v159
    %407 = vst [vmem:[#allocation4 + $0x8] sm:$0xff] %v160
    %408 = vst [vmem:[#allocation4 + $0x10] sm:$0xff] %v161
    %409 = vst [vmem:[#allocation4 + $0x18] sm:$0xff] %v162
    %410 = vst [vmem:[#allocation4 + $0x20] sm:$0xff] %v163
    // Predicated region
    $region10: #{_run_trials.1} parent=1 // pred_check
      _
    $region11: #{_run_trials.1} parent=1 // pred_check_branch
      %412 = sbr.rel (0) target = $region13
    $region12: #{_run_trials.1} parent=1 // pred_region
      %s414 = ssub.s32 640, 640
      %415 = vsyncadd [#allocation3], %s414
      %s416 = sshll.u32 [#allocation2], 4
      %s417 = int_to_ptr.vmem [resolvable:$true] %s416
      %422 = dma.vmem_to_hbm [thread:$0]  %s417, 640, %s2, [#allocation3], 128, 128, 8
    $region13: #{_run_trials.1} parent=1 // pred_fallthru
      _
    // Predicated region
    $region14: #{_run_trials.1} parent=1 // pred_check
      _
    $region15: #{_run_trials.1} parent=1 // pred_check_branch
      %424 = sbr.rel (0) target = $region17
    $region16: #{_run_trials.1} parent=1 // pred_region
      %s426 = ssub.s32 640, 640
      %427 = vsyncadd [#allocation5], %s426
      %s428 = sshll.u32 [#allocation4], 4
      %s429 = int_to_ptr.vmem [resolvable:$true] %s428
      %434 = dma.vmem_to_hbm [thread:$0]  %s429, 640, %s3, [#allocation5], 128, 128, 8
    $region17: #{_run_trials.1} parent=1 // pred_fallthru
      _
    // Predicated region
    $region18: #{_run_trials.1} parent=1 // pred_check
      _
    $region19: #{_run_trials.1} parent=1 // pred_check_branch
      %436 = sbr.rel (0) target = $region21
    $region20: #{_run_trials.1} parent=1 // pred_region
      %437 = dma.done [#allocation3], 640
    $region21: #{_run_trials.1} parent=1 // pred_fallthru
      _
    // Predicated region
    $region22: #{_run_trials.1} parent=1 // pred_check
      _
    $region23: #{_run_trials.1} parent=1 // pred_check_branch
      %439 = sbr.rel (0) target = $region25
    $region24: #{_run_trials.1} parent=1 // pred_region
      %440 = dma.done [#allocation5], 640
    $region25: #{_run_trials.1} parent=1 // pred_fallthru
      _
    %441 = vsyncpa [#allocation3], 1
    %442 = vsyncpa [#allocation5], 1

</llo_original>
